<compile_context>
chip_gen: v6e
topology: v6e:2x2x1
jax: 0.10.0
libtpu: 0.0.40
codegen_flags: <defaults>
</compile_context>

<pallas_src>
import functools

import jax
import jax.numpy as jnp
from jax import lax
from jax.experimental import pallas as pl
from jax.experimental.pallas import tpu as pltpu


def _round_up(v, m):
    return ((v + m - 1) // m) * m


def _sgcn_kernel(x_ref, w_all_ref, b_all_ref, wc_ref, bc_ref, o_ref, *,
                 planes_padded, valid_hw, padded_hw, block_b, matmul_dtype):
    Pp = planes_padded
    use_cast = jnp.dtype(matmul_dtype) != jnp.dtype(jnp.float32)

    def cast(a):
        return a.astype(matmul_dtype) if use_cast else a

    w_all = w_all_ref[...]                                   # (3Pp, C) f32
    b_all = b_all_ref[...]                                   # (3Pp, 1) f32
    wc = wc_ref[...]                                         # (C, Pp)  f32
    bc = bc_ref[...]                                         # (C, 1)   f32
    w_all_mm = cast(w_all)

    # Lane-validity mask: (1, HWp) iota, broadcast inside the where so the
    # VPU mask-generation cost is independent of P.
    lane_valid = None
    if valid_hw != padded_hw:
        lane = lax.broadcasted_iota(jnp.int32, (1, padded_hw), 1)
        lane_valid = lane < valid_hw

    neg_inf = jnp.float32(-jnp.inf)

    for i in range(block_b):                                 # small, static
        x = x_ref[i]                                         # (C, HWp) f32

        # Fused 1x1 projections: [theta; nu_pre; ksi_pre] = W_all @ x + b_all
        proj = jnp.dot(w_all_mm, cast(x),
                       preferred_element_type=jnp.float32) + b_all
        theta = proj[:Pp]                                    # (Pp, HWp)
        nk = proj[Pp:3 * Pp]                                 # (2Pp, HWp)

        if lane_valid is not None:
            nk = jnp.where(lane_valid, nk, neg_inf)

        # Joint max for both softmaxes (exact: normalization is deferred to
        # the sums), single exp slab on the EUP.
        m = jnp.max(nk)
        nk_e = jnp.exp(nk - m)                               # (2Pp, HWp)
        nu_e = nk_e[:Pp]
        ksi_e = nk_e[Pp:]
        sum_nu = jnp.sum(nu_e)
        sum_ksi = jnp.sum(ksi_e)

        # Unnormalized F_s = nu_e @ ksi_e^T, contracting over HW directly
        # (no transpose materialized).
        f_s_un = lax.dot_general(
            nu_e, ksi_e,
            dimension_numbers=(((1,), (1,)), ((), ())),
            preferred_element_type=jnp.float32)              # (Pp, Pp)

        # Reassociated output path: tiny (C,Pp)@(Pp,Pp) first, scale folded
        # in, then one wide K=Pp matmul.  No (Pp, HWp) AF_s intermediate.
        scale = 1.0 / (sum_nu * sum_ksi)
        w_eff = jnp.dot(wc, f_s_un,
                        preferred_element_type=jnp.float32) * scale   # (C, Pp)

        f_sgcn = jnp.dot(cast(w_eff), cast(theta),
                         preferred_element_type=jnp.float32) + bc     # (C, HWp)
        o_ref[i] = x + f_sgcn


def _vmem_limit_bytes(default_bytes=48 * 1024 * 1024):
    """Generation-aware scoped-VMEM limit: ~75% of physical VMEM."""
    try:
        info = pltpu.get_tpu_info()
        cap = getattr(info, "vmem_capacity_bytes", None)
        if cap:
            return int(cap) * 3 // 4
    except Exception:
        pass
    return default_bytes


def _pick_block_b(B, C, hw_pad):
    """Batch several small images per grid step (amortize per-step overhead,
    keep DMAs large) while keeping >= 2 grid steps when B >= 2 so both
    TensorCores of a v7x megacore get work."""
    per_image_bytes = C * hw_pad * 4
    target_bytes = 2 * 1024 * 1024
    best = 1
    for bt in range(2, min(B, 8) + 1):
        if B % bt != 0:
            continue
        if bt * per_image_bytes > target_bytes:
            break
        if B >= 2 and (B // bt) < 2:
            continue
        best = bt
    return best


def sgcn_forward(x, params, *, matmul_dtype=jnp.bfloat16):
    """x: (B, C, H, W) float32 NCHW.  Returns (B, C, H, W) float32.

    matmul_dtype: operand dtype fed to the two big MXU matmuls (accumulation
    is always f32, the softmax path is always f32).  bf16 is the recommended
    production setting; pass jnp.float32 for bit-closest-to-reference output.
    """
    B, C, H, W = x.shape
    HW = H * W
    P = params["w_theta"].shape[0]
    Pp = _round_up(P, 8)           # sublane-align each projection row block
    hw_pad = _round_up(HW, 128)    # lane-align the flattened spatial axis

    x_flat = x.reshape(B, C, HW)
    if hw_pad != HW:
        x_flat = jnp.pad(x_flat, ((0, 0), (0, 0), (0, hw_pad - HW)))

    def pad_proj(w, b, bias_pad):
        if Pp == P:
            return w, b
        w = jnp.pad(w, ((0, Pp - P), (0, 0)))
        b = jnp.pad(b, (0, Pp - P), constant_values=bias_pad)
        return w, b

    # theta pad rows: zero weight/bias (they hit zero columns downstream).
    # nu/ksi pad rows: -inf bias so exp() == 0 -> they vanish from the
    # softmax sums and from F_s.
    w_t, b_t = pad_proj(params["w_theta"], params["b_theta"], 0.0)
    w_n, b_n = pad_proj(params["w_nu"], params["b_nu"], -jnp.inf)
    w_k, b_k = pad_proj(params["w_ksi"], params["b_ksi"], -jnp.inf)
    w_all = jnp.concatenate([w_t, w_n, w_k], axis=0)              # (3Pp, C)
    b_all = jnp.concatenate([b_t, b_n, b_k]).reshape(3 * Pp, 1)   # (3Pp, 1)

    wc = params["w_conv"]                                         # (C, P)
    if Pp != P:
        wc = jnp.pad(wc, ((0, 0), (0, Pp - P)))                   # (C, Pp)
    bc = params["b_conv"].reshape(C, 1)

    bt = _pick_block_b(B, C, hw_pad)

    kernel = functools.partial(
        _sgcn_kernel, planes_padded=Pp, valid_hw=HW, padded_hw=hw_pad,
        block_b=bt, matmul_dtype=matmul_dtype)

    # Weights/biases have constant index maps; Pallas keeps them resident.
    def full(arr):
        n = arr.ndim
        return pl.BlockSpec(arr.shape, lambda b, _n=n: (0,) * _n)

    out_flat = pl.pallas_call(
        kernel,
        out_shape=jax.ShapeDtypeStruct((B, C, hw_pad), jnp.float32),
        grid_spec=pltpu.PrefetchScalarGridSpec(
            num_scalar_prefetch=0,
            grid=(B // bt,),
            in_specs=[
                pl.BlockSpec((bt, C, hw_pad), lambda b: (b, 0, 0)),   # x
                full(w_all), full(b_all),                             # fused proj
                full(wc), full(bc),                                   # final conv
            ],
            out_specs=pl.BlockSpec((bt, C, hw_pad), lambda b: (b, 0, 0)),
        ),
        compiler_params=pltpu.CompilerParams(
            dimension_semantics=("parallel",),
            vmem_limit_bytes=_vmem_limit_bytes()),
    )(x_flat, w_all, b_all, wc, bc)

    return out_flat[:, :, :HW].reshape(B, C, H, W)


def sgcn_reference(x, params):
    """Pure-JAX reference mirroring the PyTorch forward exactly."""
    B, C, H, W = x.shape
    HW = H * W
    P = params["w_theta"].shape[0]
    xf = x.reshape(B, C, HW)

    def conv1x1(w, b, inp):   # inp (B, Cin, HW) -> (B, Cout, HW)
        return jnp.einsum("oc,bcs->bos", w, inp) + b[None, :, None]

    theta = conv1x1(params["w_theta"], params["b_theta"], xf)        # (B,P,HW)
    nu = conv1x1(params["w_nu"], params["b_nu"], xf).reshape(B, P * HW)
    nu = jax.nn.softmax(nu, axis=-1).reshape(B, P, HW)
    ksi = conv1x1(params["w_ksi"], params["b_ksi"], xf).reshape(B, P * HW)
    ksi = jax.nn.softmax(ksi, axis=-1).reshape(B, P, HW)
    F_s = jnp.einsum("bps,bqs->bpq", nu, ksi)                        # (B,P,P)
    AF_s = jnp.einsum("bpq,bqs->bps", F_s, theta)                    # (B,P,HW)
    out = conv1x1(params["w_conv"], params["b_conv"], AF_s)          # (B,C,HW)
    return (xf + out).reshape(B, C, H, W)


def _make_params(key, C, P):
    keys = jax.random.split(key, 8)
    return {
        "w_theta": 0.1 * jax.random.normal(keys[0], (P, C), dtype=jnp.float32),
        "b_theta": 0.1 * jax.random.normal(keys[1], (P,), dtype=jnp.float32),
        "w_nu":    0.1 * jax.random.normal(keys[2], (P, C), dtype=jnp.float32),
        "b_nu":    0.1 * jax.random.normal(keys[3], (P,), dtype=jnp.float32),
        "w_ksi":   0.1 * jax.random.normal(keys[4], (P, C), dtype=jnp.float32),
        "b_ksi":   0.1 * jax.random.normal(keys[5], (P,), dtype=jnp.float32),
        "w_conv":  0.1 * jax.random.normal(keys[6], (C, P), dtype=jnp.float32),
        "b_conv":  0.1 * jax.random.normal(keys[7], (C,), dtype=jnp.float32),
    }


if __name__ == "__main__":
    key = jax.random.PRNGKey(0)
    kx, kp, kx2, kx3 = jax.random.split(key, 4)

    B, C, P, H, W = 2, 4, 4, 16, 16
    x = jax.random.normal(kx, (B, C, H, W), dtype=jnp.float32)
    params = _make_params(kp, C, P)
    ref = sgcn_reference(x, params)

    # 1) Exact (f32-matmul) path: must match the reference tightly.
    out_f32 = sgcn_forward(x, params, matmul_dtype=jnp.float32)
    jax.block_until_ready(out_f32)
    assert out_f32.shape == (B, C, H, W)
    assert jnp.allclose(out_f32, ref, atol=5e-5, rtol=5e-5), "f32 path mismatch"

    # 2) Default path (bf16 MXU operands, f32 accumulation).
    out_bf16 = sgcn_forward(x, params)
    jax.block_until_ready(out_bf16)
    assert jnp.allclose(out_bf16, ref, atol=3e-2, rtol=3e-2), "bf16 path mismatch"

    # 3) Non-lane-aligned spatial size -> padded / masked softmax path.
    H2, W2 = 10, 10
    x2 = jax.random.normal(kx2, (B, C, H2, W2), dtype=jnp.float32)
    out2 = sgcn_forward(x2, params, matmul_dtype=jnp.float32)
    jax.block_until_ready(out2)
    ref2 = sgcn_reference(x2, params)
    assert out2.shape == (B, C, H2, W2)
    assert jnp.allclose(out2, ref2, atol=5e-5, rtol=5e-5), "padded path mismatch"

    # 4) Larger batch of small images -> block_b > 1 (multiple images per
    #    grid step) plus padded lanes.
    B3, H3, W3 = 4, 8, 8
    x3 = jax.random.normal(kx3, (B3, C, H3, W3), dtype=jnp.float32)
    out3 = sgcn_forward(x3, params, matmul_dtype=jnp.float32)
    jax.block_until_ready(out3)
    ref3 = sgcn_reference(x3, params)
    assert out3.shape == (B3, C, H3, W3)
    assert jnp.allclose(out3, ref3, atol=5e-5, rtol=5e-5), "batched-block path mismatch"

    print("KERNEL_OK")
</pallas_src>

<mosaic_0001>
module attributes {stable_mosaic.version = 11 : i64} {
  func.func @_sgcn_kernel(%arg0: i32, %arg1: memref<1x4x256xf32, #tpu.memory_space<vmem>>, %arg2: memref<24x4xf32, #tpu.memory_space<vmem>>, %arg3: memref<24x1xf32, #tpu.memory_space<vmem>>, %arg4: memref<4x8xf32, #tpu.memory_space<vmem>>, %arg5: memref<4x1xf32, #tpu.memory_space<vmem>>, %arg6: memref<1x4x256xf32, #tpu.memory_space<vmem>>) attributes {dimension_semantics = [#tpu.dimension_semantics<parallel>], iteration_bounds = array<i64: 2>, scalar_prefetch = 0 : i64, scratch_operands = 0 : i64, tpu.core_type = #tpu.core_type<tc>, window_params = [{transform_indices = @transform_0, window_bounds = array<i64: 1, 4, 256>}, {pipeline_mode = #tpu.pipeline_mode<synchronous>, transform_indices = @transform_1, window_bounds = array<i64: 24, 4>}, {pipeline_mode = #tpu.pipeline_mode<synchronous>, transform_indices = @transform_2, window_bounds = array<i64: 24, 1>}, {pipeline_mode = #tpu.pipeline_mode<synchronous>, transform_indices = @transform_3, window_bounds = array<i64: 4, 8>}, {pipeline_mode = #tpu.pipeline_mode<synchronous>, transform_indices = @transform_4, window_bounds = array<i64: 4, 1>}, {transform_indices = @transform_5, window_bounds = array<i64: 1, 4, 256>}]} {
    %c0 = arith.constant 0 : index
    %c0_0 = arith.constant 0 : index
    %0 = vector.load %arg2[%c0, %c0_0] : memref<24x4xf32, #tpu.memory_space<vmem>>, vector<24x4xf32>
    %c0_1 = arith.constant 0 : index
    %c0_2 = arith.constant 0 : index
    %1 = vector.load %arg3[%c0_1, %c0_2] : memref<24x1xf32, #tpu.memory_space<vmem>>, vector<24x1xf32>
    %c0_3 = arith.constant 0 : index
    %c0_4 = arith.constant 0 : index
    %2 = vector.load %arg4[%c0_3, %c0_4] : memref<4x8xf32, #tpu.memory_space<vmem>>, vector<4x8xf32>
    %c0_5 = arith.constant 0 : index
    %c0_6 = arith.constant 0 : index
    %3 = vector.load %arg5[%c0_5, %c0_6] : memref<4x1xf32, #tpu.memory_space<vmem>>, vector<4x1xf32>
    %c0_7 = arith.constant 0 : index
    %c0_8 = arith.constant 0 : index
    %c0_9 = arith.constant 0 : index
    %4 = vector.load %arg1[%c0_7, %c0_8, %c0_9] : memref<1x4x256xf32, #tpu.memory_space<vmem>>, vector<1x4x256xf32>
    %5 = vector.shape_cast %4 : vector<1x4x256xf32> to vector<4x256xf32>
    %cst = arith.constant dense<0.000000e+00> : vector<24x256xf32>
    %6 = tpu.matmul %0, %5, %cst {dimension_numbers = #tpu.dot_dimension_numbers<[1], [0], [0], [1], [0, 0, 1, 1], [], []>} : vector<24x4xf32>, vector<4x256xf32>, vector<24x256xf32> -> vector<24x256xf32>
    %7 = vector.broadcast %1 : vector<24x1xf32> to vector<24x256xf32>
    %8 = arith.addf %6, %7 : vector<24x256xf32>
    %9 = vector.extract_strided_slice %8 {offsets = [0, 0], sizes = [8, 256], strides = [1, 1]} : vector<24x256xf32> to vector<8x256xf32>
    %10 = vector.extract_strided_slice %8 {offsets = [8, 0], sizes = [16, 256], strides = [1, 1]} : vector<24x256xf32> to vector<16x256xf32>
    %11 = vector.shape_cast %10 : vector<16x256xf32> to vector<1x16x256xf32>
    %cst_10 = arith.constant dense<0xFF800000> : vector<1xf32>
    %12 = vector.multi_reduction <maximumf>, %11, %cst_10 [1, 2] : vector<1x16x256xf32> to vector<1xf32>
    %13 = vector.shape_cast %12 : vector<1xf32> to vector<1x1x1xf32>
    %14 = vector.extract %13[0, 0, 0] : f32 from vector<1x1x1xf32>
    %15 = vector.broadcast %14 : f32 to vector<16x256xf32>
    %16 = arith.subf %10, %15 : vector<16x256xf32>
    %17 = math.exp %16 : vector<16x256xf32>
    %18 = vector.extract_strided_slice %17 {offsets = [0, 0], sizes = [8, 256], strides = [1, 1]} : vector<16x256xf32> to vector<8x256xf32>
    %19 = vector.extract_strided_slice %17 {offsets = [8, 0], sizes = [8, 256], strides = [1, 1]} : vector<16x256xf32> to vector<8x256xf32>
    %20 = vector.shape_cast %18 : vector<8x256xf32> to vector<1x8x256xf32>
    %cst_11 = arith.constant dense<0.000000e+00> : vector<1xf32>
    %21 = vector.multi_reduction <add>, %20, %cst_11 [1, 2] : vector<1x8x256xf32> to vector<1xf32>
    %22 = vector.shape_cast %21 : vector<1xf32> to vector<1x1x1xf32>
    %23 = vector.extract %22[0, 0, 0] : f32 from vector<1x1x1xf32>
    %24 = vector.shape_cast %19 : vector<8x256xf32> to vector<1x8x256xf32>
    %cst_12 = arith.constant dense<0.000000e+00> : vector<1xf32>
    %25 = vector.multi_reduction <add>, %24, %cst_12 [1, 2] : vector<1x8x256xf32> to vector<1xf32>
    %26 = vector.shape_cast %25 : vector<1xf32> to vector<1x1x1xf32>
    %27 = vector.extract %26[0, 0, 0] : f32 from vector<1x1x1xf32>
    %cst_13 = arith.constant dense<0.000000e+00> : vector<8x8xf32>
    %28 = tpu.matmul %18, %19, %cst_13 {dimension_numbers = #tpu.dot_dimension_numbers<[1], [1], [0], [0], [0, 0, 1, 0], [], []>} : vector<8x256xf32>, vector<8x256xf32>, vector<8x8xf32> -> vector<8x8xf32>
    %29 = arith.mulf %23, %27 : f32
    %cst_14 = arith.constant 1.000000e+00 : f32
    %30 = arith.divf %cst_14, %29 : f32
    %cst_15 = arith.constant dense<0.000000e+00> : vector<4x8xf32>
    %31 = tpu.matmul %2, %28, %cst_15 {dimension_numbers = #tpu.dot_dimension_numbers<[1], [0], [0], [1], [0, 0, 1, 1], [], []>} : vector<4x8xf32>, vector<8x8xf32>, vector<4x8xf32> -> vector<4x8xf32>
    %32 = vector.broadcast %30 : f32 to vector<4x8xf32>
    %33 = arith.mulf %31, %32 : vector<4x8xf32>
    %cst_16 = arith.constant dense<0.000000e+00> : vector<4x256xf32>
    %34 = tpu.matmul %33, %9, %cst_16 {dimension_numbers = #tpu.dot_dimension_numbers<[1], [0], [0], [1], [0, 0, 1, 1], [], []>} : vector<4x8xf32>, vector<8x256xf32>, vector<4x256xf32> -> vector<4x256xf32>
    %35 = vector.broadcast %3 : vector<4x1xf32> to vector<4x256xf32>
    %36 = arith.addf %34, %35 : vector<4x256xf32>
    %37 = arith.addf %5, %36 : vector<4x256xf32>
    %c0_17 = arith.constant 0 : index
    %c0_18 = arith.constant 0 : index
    %c0_19 = arith.constant 0 : index
    %38 = vector.load %arg6[%c0_17, %c0_18, %c0_19] : memref<1x4x256xf32, #tpu.memory_space<vmem>>, vector<1x4x256xf32>
    %39 = vector.shape_cast %38 : vector<1x4x256xf32> to vector<4x256xf32>
    %40 = vector.shape_cast %37 : vector<4x256xf32> to vector<1x4x256xf32>
    tpu.vector_store %arg6[%c0_17, %c0_18, %c0_19], %40 {strides = array<i32>} : memref<1x4x256xf32, #tpu.memory_space<vmem>>, vector<1x4x256xf32>,
    return
  }
  func.func @transform_0(%arg0: i32) -> (i32, i32, i32) {
    %c0_i32 = arith.constant 0 : i32
    %c0_i32_0 = arith.constant 0 : i32
    %c0_i32_1 = arith.constant 0 : i32
    return %arg0, %c0_i32, %c0_i32_0 : i32, i32, i32
  }
  func.func @transform_1(%arg0: i32) -> (i32, i32) {
    %c0_i32 = arith.constant 0 : i32
    %c0_i32_0 = arith.constant 0 : i32
    %c0_i32_1 = arith.constant 0 : i32
    return %c0_i32, %c0_i32_0 : i32, i32
  }
  func.func @transform_2(%arg0: i32) -> (i32, i32) {
    %c0_i32 = arith.constant 0 : i32
    %c0_i32_0 = arith.constant 0 : i32
    %c0_i32_1 = arith.constant 0 : i32
    return %c0_i32, %c0_i32_0 : i32, i32
  }
  func.func @transform_3(%arg0: i32) -> (i32, i32) {
    %c0_i32 = arith.constant 0 : i32
    %c0_i32_0 = arith.constant 0 : i32
    %c0_i32_1 = arith.constant 0 : i32
    return %c0_i32, %c0_i32_0 : i32, i32
  }
  func.func @transform_4(%arg0: i32) -> (i32, i32) {
    %c0_i32 = arith.constant 0 : i32
    %c0_i32_0 = arith.constant 0 : i32
    %c0_i32_1 = arith.constant 0 : i32
    return %c0_i32, %c0_i32_0 : i32, i32
  }
  func.func @transform_5(%arg0: i32) -> (i32, i32, i32) {
    %c0_i32 = arith.constant 0 : i32
    %c0_i32_0 = arith.constant 0 : i32
    %c0_i32_1 = arith.constant 0 : i32
    return %arg0, %c0_i32, %c0_i32_0 : i32, i32, i32
  }
}

</mosaic_0001>

<llo_original>
// kernel: tpu_custom_call.1
$region0: #{tpu_custom_call.1}
  #allocation0 [shape = 'u32[]', space=smem, size = 0x4, offset = 0x4, fixed_abs, tag = 'smem constant byte address 0x4 - core index']
  #allocation1 [shape = 'u32[144,128]{1,0:T(1,128)}', space=vmem, size = 0x12000, scoped, tag = 'internal scratch']
  %s0 = inlined_call_operand.vmem [shape: f32[2,4,256], index: 0, kind: input, shape index: {}]
  %s1 = inlined_call_operand.vmem [shape: f32[24,4], index: 1, kind: input, shape index: {}]
  %s2 = inlined_call_operand.vmem [shape: f32[24,1], index: 2, kind: input, shape index: {}]
  %s3 = inlined_call_operand.vmem [shape: f32[4,8], index: 3, kind: input, shape index: {}]
  %s4 = inlined_call_operand.vmem [shape: f32[4,1], index: 4, kind: input, shape index: {}]
  %s5 = inlined_call_operand.hbm [shape: f32[2,4,256], index: 5, kind: output, shape index: {}]
  %s6 = sld [smem:[#allocation0]]
  $region53: #{tpu_custom_call.1} parent=0
    _
  %s8 = ssub.s32 1, %s6
  %s9 = scalar_select 0, %s8, %s6
  $region1: #{tpu_custom_call.1} parent=0
    #allocation2 [shape = 'u8[8192]{0}', space=vmem, size = 0x2000, scoped, tag = 'output window, operand 0']
    #allocation3 [shape = 's32[2]{0}', space=sflag, size = 0x8, scoped, tag = 'scoped memory for tpu_custom_call.1']
    %10 = vsyncpa [#allocation3], 0
    %s11 = scalar_lea.sflag [#allocation3], 1
    %12 = vsyncpa %s11, 0
    loop: start=0, step=1, limit=4
    $region2: #{tpu_custom_call.1} parent=1 // loop_pre_header
      _
    $region3: #{tpu_custom_call.1} parent=1 // loop_header
      %s14 = sphi 0, %s18
      %p15 = scmp.ge.s32.totalorder %s14, 4
      %s24 = sphi 0, %s26
      %s27 = sphi 0, %s24
      %s28 = sphi 0, %s27
      %s44 = sphi 0, %s28
      %s48 = sphi 0, %s48
      %s50 = sphi 0, %s48
      %s51 = sphi 0, %s50
      %s65 = sphi 0, %s51
      %s69 = sphi 0, %s69
      %s71 = sphi 0, %s69
      %s72 = sphi 0, %s71
      %s86 = sphi 0, %s72
      %s90 = sphi 0, %s90
      %s92 = sphi 0, %s90
      %s93 = sphi 0, %s92
      %s107 = sphi 0, %s93
      %s111 = sphi 0, %s111
      %s113 = sphi 0, %s111
      %s114 = sphi 0, %s113
      %s128 = sphi 0, %s114
      %s134 = sphi 0, %s136
      %s137 = sphi 0, %s134
      %s138 = sphi 0, %s137
      %s154 = sphi 0, %s138
    $region4: #{tpu_custom_call.1} parent=1 // loop_header_branch
      %17 = sbr.rel (%p15) target = $region8
    $region5: #{tpu_custom_call.1} parent=1 // loop_body
      %s19 = ssub.s32 %s14, 1
      %s20 = ssub.s32 %s14, 2
      %s21 = sadd.s32 %s14, 1
      %s22 = ssub.s32 %s14, %s21
      %p23 = scmp.eq.s32.totalorder %s22, 0
      %s25 = sadd.s32 %s24, 1
      %s26 = scalar_select %p23, %s24, %s25
      %p29 = pneg %p23
      %p30 = scmp.eq.s32.totalorder %s14, 1
      %p31 = por %p29, %p30
      %p32 = scmp.ne.s32.totalorder %s24, %s27
      %p33 = scmp.eq.s32.totalorder %s14, 0
      %p34 = por %p32, %p33
      %p35 = scmp.ne.s32.totalorder %s24, %s27
      %p36 = scmp.eq.s32.totalorder %s19, 1
      %p37 = por %p35, %p36
      %p38 = scmp.ne.s32.totalorder %s27, %s28
      %p39 = scmp.eq.s32.totalorder %s19, 0
      %p40 = por %p38, %p39
      %p41 = scmp.ne.s32.totalorder %s27, %s28
      %p42 = scmp.eq.s32.totalorder %s20, 1
      %p43 = por %p41, %p42
      %p45 = scmp.ne.s32.totalorder %s28, %s44
      %p46 = scmp.eq.s32.totalorder %s20, 0
      %p47 = por %p45, %p46
      %s49 = sadd.s32 %s48, 1
      %p52 = scmp.eq.s32.totalorder %s14, 1
      %p53 = scmp.ne.s32.totalorder %s48, %s50
      %p54 = scmp.eq.s32.totalorder %s14, 0
      %p55 = por %p53, %p54
      %p56 = scmp.ne.s32.totalorder %s48, %s50
      %p57 = scmp.eq.s32.totalorder %s19, 1
      %p58 = por %p56, %p57
      %p59 = scmp.ne.s32.totalorder %s50, %s51
      %p60 = scmp.eq.s32.totalorder %s19, 0
      %p61 = por %p59, %p60
      %p62 = scmp.ne.s32.totalorder %s50, %s51
      %p63 = scmp.eq.s32.totalorder %s20, 1
      %p64 = por %p62, %p63
      %p66 = scmp.ne.s32.totalorder %s51, %s65
      %p67 = scmp.eq.s32.totalorder %s20, 0
      %p68 = por %p66, %p67
      %s70 = sadd.s32 %s69, 1
      %p73 = scmp.eq.s32.totalorder %s14, 1
      %p74 = scmp.ne.s32.totalorder %s69, %s71
      %p75 = scmp.eq.s32.totalorder %s14, 0
      %p76 = por %p74, %p75
      %p77 = scmp.ne.s32.totalorder %s69, %s71
      %p78 = scmp.eq.s32.totalorder %s19, 1
      %p79 = por %p77, %p78
      %p80 = scmp.ne.s32.totalorder %s71, %s72
      %p81 = scmp.eq.s32.totalorder %s19, 0
      %p82 = por %p80, %p81
      %p83 = scmp.ne.s32.totalorder %s71, %s72
      %p84 = scmp.eq.s32.totalorder %s20, 1
      %p85 = por %p83, %p84
      %p87 = scmp.ne.s32.totalorder %s72, %s86
      %p88 = scmp.eq.s32.totalorder %s20, 0
      %p89 = por %p87, %p88
      %s91 = sadd.s32 %s90, 1
      %p94 = scmp.eq.s32.totalorder %s14, 1
      %p95 = scmp.ne.s32.totalorder %s90, %s92
      %p96 = scmp.eq.s32.totalorder %s14, 0
      %p97 = por %p95, %p96
      %p98 = scmp.ne.s32.totalorder %s90, %s92
      %p99 = scmp.eq.s32.totalorder %s19, 1
      %p100 = por %p98, %p99
      %p101 = scmp.ne.s32.totalorder %s92, %s93
      %p102 = scmp.eq.s32.totalorder %s19, 0
      %p103 = por %p101, %p102
      %p104 = scmp.ne.s32.totalorder %s92, %s93
      %p105 = scmp.eq.s32.totalorder %s20, 1
      %p106 = por %p104, %p105
      %p108 = scmp.ne.s32.totalorder %s93, %s107
      %p109 = scmp.eq.s32.totalorder %s20, 0
      %p110 = por %p108, %p109
      %s112 = sadd.s32 %s111, 1
      %p115 = scmp.eq.s32.totalorder %s14, 1
      %p116 = scmp.ne.s32.totalorder %s111, %s113
      %p117 = scmp.eq.s32.totalorder %s14, 0
      %p118 = por %p116, %p117
      %p119 = scmp.ne.s32.totalorder %s111, %s113
      %p120 = scmp.eq.s32.totalorder %s19, 1
      %p121 = por %p119, %p120
      %p122 = scmp.ne.s32.totalorder %s113, %s114
      %p123 = scmp.eq.s32.totalorder %s19, 0
      %p124 = por %p122, %p123
      %p125 = scmp.ne.s32.totalorder %s113, %s114
      %p126 = scmp.eq.s32.totalorder %s20, 1
      %p127 = por %p125, %p126
      %p129 = scmp.ne.s32.totalorder %s114, %s128
      %p130 = scmp.eq.s32.totalorder %s20, 0
      %p131 = por %p129, %p130
      %s132 = ssub.s32 %s14, %s21
      %p133 = scmp.eq.s32.totalorder %s132, 0
      %s135 = sadd.s32 %s134, 1
      %s136 = scalar_select %p133, %s134, %s135
      %p139 = pneg %p133
      %p140 = scmp.eq.s32.totalorder %s14, 1
      %p141 = por %p139, %p140
      %p142 = scmp.ne.s32.totalorder %s134, %s137
      %p143 = scmp.eq.s32.totalorder %s14, 0
      %p144 = por %p142, %p143
      %p145 = scmp.ne.s32.totalorder %s134, %s137
      %p146 = scmp.eq.s32.totalorder %s19, 1
      %p147 = por %p145, %p146
      %p148 = scmp.ne.s32.totalorder %s137, %s138
      %p149 = scmp.eq.s32.totalorder %s19, 0
      %p150 = por %p148, %p149
      %p151 = scmp.ne.s32.totalorder %s137, %s138
      %p152 = scmp.eq.s32.totalorder %s20, 1
      %p153 = por %p151, %p152
      %p155 = scmp.ne.s32.totalorder %s138, %s154
      %p156 = scmp.eq.s32.totalorder %s20, 0
      %p157 = por %p155, %p156
      %p158 = scmp.le.s32.totalorder 1, %s14
      %p159 = scmp.lt.s32.totalorder %s14, 3
      %p160 = pnand %p158, %p159
      %p161 = pneg %p160
      // Predicated region
      $region9: #{tpu_custom_call.1} parent=5 // pred_check
        _
      $region10: #{tpu_custom_call.1} parent=5 // pred_check_branch
        %163 = sbr.rel (%p160) target = $region12
      $region11: #{tpu_custom_call.1} parent=5 // pred_region
        %s164 = ssub.s32 %s14, 1
        // Predicated region
        $region13: #{tpu_custom_call.1} parent=11 // pred_check
          %p165 = pneg %p61
        $region14: #{tpu_custom_call.1} parent=11 // pred_check_branch
          %167 = sbr.rel (%p165) target = $region16
        $region15: #{tpu_custom_call.1} parent=11 // pred_region
          _
        $region16: #{tpu_custom_call.1} parent=11 // pred_fallthru
          _
        // Predicated region
        $region17: #{tpu_custom_call.1} parent=11 // pred_check
          %p168 = pneg %p82
        $region18: #{tpu_custom_call.1} parent=11 // pred_check_branch
          %170 = sbr.rel (%p168) target = $region20
        $region19: #{tpu_custom_call.1} parent=11 // pred_region
          _
        $region20: #{tpu_custom_call.1} parent=11 // pred_fallthru
          _
        // Predicated region
        $region21: #{tpu_custom_call.1} parent=11 // pred_check
          %p171 = pneg %p103
        $region22: #{tpu_custom_call.1} parent=11 // pred_check_branch
          %173 = sbr.rel (%p171) target = $region24
        $region23: #{tpu_custom_call.1} parent=11 // pred_region
          _
        $region24: #{tpu_custom_call.1} parent=11 // pred_fallthru
          _
        // Predicated region
        $region25: #{tpu_custom_call.1} parent=11 // pred_check
          %p174 = pneg %p124
        $region26: #{tpu_custom_call.1} parent=11 // pred_check_branch
          %176 = sbr.rel (%p174) target = $region28
        $region27: #{tpu_custom_call.1} parent=11 // pred_region
          _
        $region28: #{tpu_custom_call.1} parent=11 // pred_fallthru
          _
      $region12: #{tpu_custom_call.1} parent=5 // pred_fallthru
        _
      %p177 = scmp.lt.s32.totalorder %s14, 2
      // Predicated region
      $region29: #{tpu_custom_call.1} parent=5 // pred_check
        %p178 = pneg %p177
      $region30: #{tpu_custom_call.1} parent=5 // pred_check_branch
        %180 = sbr.rel (%p178) target = $region32
      $region31: #{tpu_custom_call.1} parent=5 // pred_region
        // Predicated region
        $region33: #{tpu_custom_call.1} parent=31 // pred_check
          %p181 = pneg %p34
        $region34: #{tpu_custom_call.1} parent=31 // pred_check_branch
          %183 = sbr.rel (%p181) target = $region36
        $region35: #{tpu_custom_call.1} parent=31 // pred_region
          %p184 = scmp.lt.s32.totalorder %s14, 1
          %s185 = scalar_select %p184, %s14, 1
          %s186 = smul.addr %s185, 2
          %s187 = smul.addr %s186, 4
          %s188 = scalar_lea.vmem %s0, %s187
        $region36: #{tpu_custom_call.1} parent=31 // pred_fallthru
          _
      $region32: #{tpu_custom_call.1} parent=5 // pred_fallthru
        _
      %p189 = scmp.le.s32.totalorder 1, %s14
      %p190 = scmp.lt.s32.totalorder %s14, 3
      %p191 = pnand %p189, %p190
      %p192 = pneg %p191
      // Predicated region
      $region37: #{tpu_custom_call.1} parent=5 // pred_check
        _
      $region38: #{tpu_custom_call.1} parent=5 // pred_check_branch
        %194 = sbr.rel (%p191) target = $region40
      $region39: #{tpu_custom_call.1} parent=5 // pred_region
        %s195 = ssub.s32 %s14, 1
        %p196 = scmp.lt.s32.totalorder %s19, 1
        %s197 = scalar_select %p196, %s19, 1
        %s198 = smul.addr %s197, 2
        %s199 = smul.addr %s198, 4
        %s200 = scalar_lea.vmem %s0, %s199
        %p201 = pneg %p40
        %p202 = pneg %p37
        %p203 = pneg %p61
        %p204 = pneg %p58
        %p205 = pneg %p82
        %p206 = pneg %p79
        %p207 = pneg %p103
        %p208 = pneg %p100
        %p209 = pneg %p124
        %p210 = pneg %p121
        %p211 = pneg %p150
        %p212 = pneg %p147
        %s213 = sand.u32 %s137, 1
        %s214 = scalar_lea.sflag [#allocation3], %s213
        %s215 = sand.u32 %s137, 1
        %s216 = smul.addr %s215, 8
        %s217 = scalar_lea.vmem [#allocation2], %s216
        %p218 = scmp.lt.s32.totalorder %s19, 1
        %s219 = scalar_select %p218, %s19, 1
        %s220 = smul.addr %s219, 2
        %s221 = smul.addr %s220, 4
        %s222 = scalar_lea.vmem %s0, %s221
        %v223 = vld [vmem:[%s1] sm:$0xff]
        %v224 = vld [vmem:[%s1 + $0x8] sm:$0xff]
        %v225 = vld [vmem:[%s1 + $0x10] sm:$0xff]
        %v226 = vld [vmem:[%s2] sm:$0xff]
        %v227 = vld [vmem:[%s2 + $0x8] sm:$0xff]
        %v228 = vld [vmem:[%s2 + $0x10] sm:$0xff]
        %v229 = vld [vmem:[%s3] sm:$0xf]
        %v230 = vld [vmem:[%s4] sm:$0xf]
        %v231 = vld [vmem:[%s222] sm:$0xff]
        %233 = vset.pattern.permute.xlu0 0
        %234 = vperm.xlu0 %233, %v226
        %v235 = vpop.permute.xlu0 %234
        %238 = vset.pattern.permute.xlu0 0
        %239 = vperm.xlu0 %238, %v227
        %v240 = vpop.permute.xlu0 %239
        %243 = vset.pattern.permute.xlu0 0
        %244 = vperm.xlu0 %243, %v228
        %v245 = vpop.permute.xlu0 %244
        %v248 = vcombine.high %v231, %v231
        %vm249 = vcmask 31744
        %v251 = vsel %vm249, %v223, 0
        %v254 = vsel %vm249, %v224, 0
        %v257 = vsel %vm249, %v225, 0
        %vm259 = vcmask 1043456
        %v260 = vsel %vm259, %v231, 0
        %v262 = vsel %vm259, %v248, 0
        %264 = vmatprep.subr.mxu0 0.0
        %265 = vmatpush1.msra.mxu0 0.0
        %266 = vmatprep.subr.mxu0 0.0
        %267 = vmatpush1.msra.mxu0 0.0
        %268 = vmatprep.subr.mxu0 0.0
        %269 = vmatpush1.msra.mxu0 0.0
        %270 = vmatprep.subr.mxu0 0.0
        %271 = vmatpush1.msra.mxu0 0.0
        %272 = vmatprep.subr.mxu0 0.0
        %273 = vmatpush1.msra.mxu0 0.0
        %274 = vmatprep.subr.mxu0 0.0
        %275 = vmatpush1.msra.mxu0 0.0
        %276 = vmatprep.subr.mxu0 0.0
        %277 = vmatpush1.msra.mxu0 0.0
        %278 = vmatprep.subr.mxu0 0.0
        %279 = vmatpush1.msra.mxu0 0.0
        %280 = vmatprep.subr.mxu0 0.0
        %281 = vmatpush1.msra.mxu0 0.0
        %282 = vmatprep.subr.mxu0 0.0
        %283 = vmatpush1.msra.mxu0 0.0
        %284 = vmatprep.subr.mxu0 0.0
        %285 = vmatpush1.msra.mxu0 0.0
        %286 = vmatprep.subr.mxu0 0.0
        %287 = vmatpush1.msra.mxu0 0.0
        %288 = vmatprep.subr.mxu0 0.0
        %289 = vmatpush1.msra.mxu0 0.0
        %290 = vmatprep.subr.mxu0 0.0
        %291 = vmatpush1.msra.mxu0 0.0
        %292 = vmatprep.subr.mxu0 0.0
        %293 = vmatpush1.msra.mxu0 0.0
        %294 = vmatprep.subr.mxu0 %v262
        %295 = vmatpush1.msra.mxu0 %v260
        %296 = vmatprep.subr.mxu0 0.0
        %297 = vmatpush2.msra.mxu0 0.0
        %298 = vmatprep.subr.mxu0 0.0
        %299 = vmatpush2.msra.mxu0 0.0
        %300 = vmatprep.subr.mxu0 0.0
        %301 = vmatpush2.msra.mxu0 0.0
        %302 = vmatprep.subr.mxu0 0.0
        %303 = vmatpush2.msra.mxu0 0.0
        %304 = vmatprep.subr.mxu0 0.0
        %305 = vmatpush2.msra.mxu0 0.0
        %306 = vmatprep.subr.mxu0 0.0
        %307 = vmatpush2.msra.mxu0 0.0
        %308 = vmatprep.subr.mxu0 0.0
        %309 = vmatpush2.msra.mxu0 0.0
        %310 = vmatprep.subr.mxu0 0.0
        %311 = vmatpush2.msra.mxu0 0.0
        %312 = vmatprep.subr.mxu0 0.0
        %313 = vmatpush2.msra.mxu0 0.0
        %314 = vmatprep.subr.mxu0 0.0
        %315 = vmatpush2.msra.mxu0 0.0
        %316 = vmatprep.subr.mxu0 0.0
        %317 = vmatpush2.msra.mxu0 0.0
        %318 = vmatprep.subr.mxu0 0.0
        %319 = vmatpush2.msra.mxu0 0.0
        %320 = vmatprep.subr.mxu0 0.0
        %321 = vmatpush2.msra.mxu0 0.0
        %322 = vmatprep.subr.mxu0 0.0
        %323 = vmatpush2.msra.mxu0 0.0
        %324 = vmatprep.subr.mxu0 0.0
        %325 = vmatpush2.msra.mxu0 0.0
        %326 = vmatprep.subr.mxu0 0.0
        %327 = vmatpush2.msra.mxu0 0.0
        %328 = vmatprep.mubr.f32.mxu0 0.0
        %329 = vmatmul.mubr.f32.gmra.mxu0 %v251
        %v330 = vpop.f32.mrf.mxu0
        %v331 = vadd.f32 %v235, %v330
        %v332 = vpop.f32.mrf.mxu0
        %v333 = vadd.f32 %v235, %v332
        %334 = vmatprep.mubr.f32.mxu0 0.0
        %335 = vmatmul.mubr.f32.gmra.mxu0 %v254
        %v336 = vpop.f32.mrf.mxu0
        %v337 = vadd.f32 %v240, %v336
        %v338 = vpop.f32.mrf.mxu0
        %v339 = vadd.f32 %v240, %v338
        %340 = vmatprep.mubr.f32.mxu0 0.0
        %341 = vmatmul.mubr.f32.gmra.mxu0 %v257
        %v342 = vpop.f32.mrf.mxu0
        %v343 = vadd.f32 %v245, %v342
        %v344 = vpop.f32.mrf.mxu0
        %v345 = vadd.f32 %v245, %v344
        %346 = vdwg.mxu0
        %v347 = vmax.f32 %v337, %v339
        %v348 = vmax.f32 %v343, %v345
        %v349 = vmax.f32 %v347, %v348
        %350 = vmax.xlane.f32.xlu0 %v349
        %v351 = vpop.xlane.xlu0 %350
        %v352 = vrot.slane %v351, 4
        %v353 = vmax.f32 %v351, %v352
        %v354 = vrot.slane %v353, 2
        %v355 = vmax.f32 %v353, %v354
        %v356 = vrot.slane %v355, 1
        %v357 = vmax.f32 %v355, %v356
        %s358 = vtos %v357
        %v359 = vstv %s358
        %v360 = vsub.f32 %v337, %v359
        %v361 = vsub.f32 %v339, %v359
        %v362 = vsub.f32 %v343, %v359
        %v363 = vsub.f32 %v345, %v359
        %v364 = vmul.f32 %v360, 1.442695
        %v365 = vpow.pop %v364
        %v366 = vmul.f32 %v361, 1.442695
        %v367 = vpow.pop %v366
        %v368 = vmul.f32 %v362, 1.442695
        %v369 = vpow.pop %v368
        %v370 = vmul.f32 %v363, 1.442695
        %v371 = vpow.pop %v370
        %v372 = vadd.f32 %v365, %v367
        %373 = vadd.xlane.f32.xlu0 %v372
        %v374 = vpop.xlane.xlu0 %373
        %v375 = vrot.slane %v374, 4
        %v376 = vadd.f32 %v374, %v375
        %v377 = vrot.slane %v376, 2
        %v378 = vadd.f32 %v376, %v377
        %v379 = vrot.slane %v378, 1
        %v380 = vadd.f32 %v378, %v379
        %s381 = vtos %v380
        %v382 = vadd.f32 %v369, %v371
        %383 = vadd.xlane.f32.xlu0 %v382
        %v384 = vpop.xlane.xlu0 %383
        %v385 = vrot.slane %v384, 4
        %v386 = vadd.f32 %v384, %v385
        %v387 = vrot.slane %v386, 2
        %v388 = vadd.f32 %v386, %v387
        %v389 = vrot.slane %v388, 1
        %v390 = vadd.f32 %v388, %v389
        %s391 = vtos %v390
        %392 = vmatprep.subr.mxu0 0.0
        %393 = vmatpush1.xpose.msra.mxu0 0.0
        %394 = vmatprep.subr.mxu0 0.0
        %395 = vmatpush1.xpose.msra.mxu0 0.0
        %396 = vmatprep.subr.mxu0 0.0
        %397 = vmatpush1.xpose.msra.mxu0 0.0
        %398 = vmatprep.subr.mxu0 0.0
        %399 = vmatpush1.xpose.msra.mxu0 0.0
        %400 = vmatprep.subr.mxu0 0.0
        %401 = vmatpush1.xpose.msra.mxu0 0.0
        %402 = vmatprep.subr.mxu0 0.0
        %403 = vmatpush1.xpose.msra.mxu0 0.0
        %404 = vmatprep.subr.mxu0 0.0
        %405 = vmatpush1.xpose.msra.mxu0 0.0
        %406 = vmatprep.subr.mxu0 0.0
        %407 = vmatpush1.xpose.msra.mxu0 0.0
        %408 = vmatprep.subr.mxu0 0.0
        %409 = vmatpush1.xpose.msra.mxu0 0.0
        %410 = vmatprep.subr.mxu0 0.0
        %411 = vmatpush1.xpose.msra.mxu0 0.0
        %412 = vmatprep.subr.mxu0 0.0
        %413 = vmatpush1.xpose.msra.mxu0 0.0
        %414 = vmatprep.subr.mxu0 0.0
        %415 = vmatpush1.xpose.msra.mxu0 0.0
        %416 = vmatprep.subr.mxu0 0.0
        %417 = vmatpush1.xpose.msra.mxu0 0.0
        %418 = vmatprep.subr.mxu0 0.0
        %419 = vmatpush1.xpose.msra.mxu0 0.0
        %420 = vmatprep.subr.mxu0 0.0
        %421 = vmatpush1.xpose.msra.mxu0 0.0
        %422 = vmatprep.subr.mxu0 %v371
        %423 = vmatpush1.xpose.msra.mxu0 %v369
        %424 = vmatprep.subr.mxu0 0.0
        %425 = vmatpush2.xpose.msra.mxu0 0.0
        %426 = vmatprep.subr.mxu0 0.0
        %427 = vmatpush2.xpose.msra.mxu0 0.0
        %428 = vmatprep.subr.mxu0 0.0
        %429 = vmatpush2.xpose.msra.mxu0 0.0
        %430 = vmatprep.subr.mxu0 0.0
        %431 = vmatpush2.xpose.msra.mxu0 0.0
        %432 = vmatprep.subr.mxu0 0.0
        %433 = vmatpush2.xpose.msra.mxu0 0.0
        %434 = vmatprep.subr.mxu0 0.0
        %435 = vmatpush2.xpose.msra.mxu0 0.0
        %436 = vmatprep.subr.mxu0 0.0
        %437 = vmatpush2.xpose.msra.mxu0 0.0
        %438 = vmatprep.subr.mxu0 0.0
        %439 = vmatpush2.xpose.msra.mxu0 0.0
        %440 = vmatprep.subr.mxu0 0.0
        %441 = vmatpush2.xpose.msra.mxu0 0.0
        %442 = vmatprep.subr.mxu0 0.0
        %443 = vmatpush2.xpose.msra.mxu0 0.0
        %444 = vmatprep.subr.mxu0 0.0
        %445 = vmatpush2.xpose.msra.mxu0 0.0
        %446 = vmatprep.subr.mxu0 0.0
        %447 = vmatpush2.xpose.msra.mxu0 0.0
        %448 = vmatprep.subr.mxu0 0.0
        %449 = vmatpush2.xpose.msra.mxu0 0.0
        %450 = vmatprep.subr.mxu0 0.0
        %451 = vmatpush2.xpose.msra.mxu0 0.0
        %452 = vmatprep.subr.mxu0 0.0
        %453 = vmatpush2.xpose.msra.mxu0 0.0
        %454 = vmatprep.subr.mxu0 0.0
        %455 = vmatpush2.xpose.msra.mxu0 0.0
        %456 = vmatprep.mubr.f32.mxu0 %v367
        %457 = vmatmul.mubr.f32.gmra.mxu0 %v365
        %v458 = vpop.f32.mrf.mxu0
        %v459 = vadd.f32 0.0, %v458
        %v460 = vpop.f32.mrf.mxu0
        %461 = vdwg.mxu0
        %s462 = smul.f32 %s381, %s391
        %v463 = vstv %s462
        %v464 = vrcp.pop %v463
        %s465 = vtos %v464
        %vm466 = vcmask 64512
        %v468 = vsel %vm466, %v229, 0
        %470 = vmatprep.subr.mxu0 0.0
        %471 = vmatpush1.msra.mxu0 0.0
        %472 = vmatprep.subr.mxu0 0.0
        %473 = vmatpush1.msra.mxu0 0.0
        %474 = vmatprep.subr.mxu0 0.0
        %475 = vmatpush1.msra.mxu0 0.0
        %476 = vmatprep.subr.mxu0 0.0
        %477 = vmatpush1.msra.mxu0 0.0
        %478 = vmatprep.subr.mxu0 0.0
        %479 = vmatpush1.msra.mxu0 0.0
        %480 = vmatprep.subr.mxu0 0.0
        %481 = vmatpush1.msra.mxu0 0.0
        %482 = vmatprep.subr.mxu0 0.0
        %483 = vmatpush1.msra.mxu0 0.0
        %484 = vmatprep.subr.mxu0 0.0
        %485 = vmatpush1.msra.mxu0 0.0
        %486 = vmatprep.subr.mxu0 0.0
        %487 = vmatpush1.msra.mxu0 0.0
        %488 = vmatprep.subr.mxu0 0.0
        %489 = vmatpush1.msra.mxu0 0.0
        %490 = vmatprep.subr.mxu0 0.0
        %491 = vmatpush1.msra.mxu0 0.0
        %492 = vmatprep.subr.mxu0 0.0
        %493 = vmatpush1.msra.mxu0 0.0
        %494 = vmatprep.subr.mxu0 0.0
        %495 = vmatpush1.msra.mxu0 0.0
        %496 = vmatprep.subr.mxu0 0.0
        %497 = vmatpush1.msra.mxu0 0.0
        %498 = vmatprep.subr.mxu0 0.0
        %499 = vmatpush1.msra.mxu0 0.0
        %500 = vmatprep.subr.mxu0 0.0
        %501 = vmatpush1.msra.mxu0 %v459
        %502 = vmatprep.subr.mxu0 0.0
        %503 = vmatpush2.msra.mxu0 0.0
        %504 = vmatprep.subr.mxu0 0.0
        %505 = vmatpush2.msra.mxu0 0.0
        %506 = vmatprep.subr.mxu0 0.0
        %507 = vmatpush2.msra.mxu0 0.0
        %508 = vmatprep.subr.mxu0 0.0
        %509 = vmatpush2.msra.mxu0 0.0
        %510 = vmatprep.subr.mxu0 0.0
        %511 = vmatpush2.msra.mxu0 0.0
        %512 = vmatprep.subr.mxu0 0.0
        %513 = vmatpush2.msra.mxu0 0.0
        %514 = vmatprep.subr.mxu0 0.0
        %515 = vmatpush2.msra.mxu0 0.0
        %516 = vmatprep.subr.mxu0 0.0
        %517 = vmatpush2.msra.mxu0 0.0
        %518 = vmatprep.subr.mxu0 0.0
        %519 = vmatpush2.msra.mxu0 0.0
        %520 = vmatprep.subr.mxu0 0.0
        %521 = vmatpush2.msra.mxu0 0.0
        %522 = vmatprep.subr.mxu0 0.0
        %523 = vmatpush2.msra.mxu0 0.0
        %524 = vmatprep.subr.mxu0 0.0
        %525 = vmatpush2.msra.mxu0 0.0
        %526 = vmatprep.subr.mxu0 0.0
        %527 = vmatpush2.msra.mxu0 0.0
        %528 = vmatprep.subr.mxu0 0.0
        %529 = vmatpush2.msra.mxu0 0.0
        %530 = vmatprep.subr.mxu0 0.0
        %531 = vmatpush2.msra.mxu0 0.0
        %532 = vmatprep.subr.mxu0 0.0
        %533 = vmatpush2.msra.mxu0 0.0
        %534 = vmatprep.mubr.f32.mxu0 0.0
        %535 = vmatmul.mubr.f32.gmra.mxu0 %v468
        %v536 = vpop.f32.mrf.mxu0
        %v537 = vadd.f32 0.0, %v536
        %v538 = vpop.f32.mrf.mxu0
        %539 = vdwg.mxu0
        %v540 = vstv %s465
        %v541 = vmul.f32 %v537, %v540
        %543 = vset.pattern.permute.xlu0 0
        %544 = vperm.xlu0 %543, %v230
        %v545 = vpop.permute.xlu0 %544
        %v548 = vsel %vm466, %v541, 0
        %550 = vmatprep.subr.mxu0 0.0
        %551 = vmatpush1.msra.mxu0 0.0
        %552 = vmatprep.subr.mxu0 0.0
        %553 = vmatpush1.msra.mxu0 0.0
        %554 = vmatprep.subr.mxu0 0.0
        %555 = vmatpush1.msra.mxu0 0.0
        %556 = vmatprep.subr.mxu0 0.0
        %557 = vmatpush1.msra.mxu0 0.0
        %558 = vmatprep.subr.mxu0 0.0
        %559 = vmatpush1.msra.mxu0 0.0
        %560 = vmatprep.subr.mxu0 0.0
        %561 = vmatpush1.msra.mxu0 0.0
        %562 = vmatprep.subr.mxu0 0.0
        %563 = vmatpush1.msra.mxu0 0.0
        %564 = vmatprep.subr.mxu0 0.0
        %565 = vmatpush1.msra.mxu0 0.0
        %566 = vmatprep.subr.mxu0 0.0
        %567 = vmatpush1.msra.mxu0 0.0
        %568 = vmatprep.subr.mxu0 0.0
        %569 = vmatpush1.msra.mxu0 0.0
        %570 = vmatprep.subr.mxu0 0.0
        %571 = vmatpush1.msra.mxu0 0.0
        %572 = vmatprep.subr.mxu0 0.0
        %573 = vmatpush1.msra.mxu0 0.0
        %574 = vmatprep.subr.mxu0 0.0
        %575 = vmatpush1.msra.mxu0 0.0
        %576 = vmatprep.subr.mxu0 0.0
        %577 = vmatpush1.msra.mxu0 0.0
        %578 = vmatprep.subr.mxu0 0.0
        %579 = vmatpush1.msra.mxu0 0.0
        %580 = vmatprep.subr.mxu0 %v333
        %581 = vmatpush1.msra.mxu0 %v331
        %582 = vmatprep.subr.mxu0 0.0
        %583 = vmatpush2.msra.mxu0 0.0
        %584 = vmatprep.subr.mxu0 0.0
        %585 = vmatpush2.msra.mxu0 0.0
        %586 = vmatprep.subr.mxu0 0.0
        %587 = vmatpush2.msra.mxu0 0.0
        %588 = vmatprep.subr.mxu0 0.0
        %589 = vmatpush2.msra.mxu0 0.0
        %590 = vmatprep.subr.mxu0 0.0
        %591 = vmatpush2.msra.mxu0 0.0
        %592 = vmatprep.subr.mxu0 0.0
        %593 = vmatpush2.msra.mxu0 0.0
        %594 = vmatprep.subr.mxu0 0.0
        %595 = vmatpush2.msra.mxu0 0.0
        %596 = vmatprep.subr.mxu0 0.0
        %597 = vmatpush2.msra.mxu0 0.0
        %598 = vmatprep.subr.mxu0 0.0
        %599 = vmatpush2.msra.mxu0 0.0
        %600 = vmatprep.subr.mxu0 0.0
        %601 = vmatpush2.msra.mxu0 0.0
        %602 = vmatprep.subr.mxu0 0.0
        %603 = vmatpush2.msra.mxu0 0.0
        %604 = vmatprep.subr.mxu0 0.0
        %605 = vmatpush2.msra.mxu0 0.0
        %606 = vmatprep.subr.mxu0 0.0
        %607 = vmatpush2.msra.mxu0 0.0
        %608 = vmatprep.subr.mxu0 0.0
        %609 = vmatpush2.msra.mxu0 0.0
        %610 = vmatprep.subr.mxu0 0.0
        %611 = vmatpush2.msra.mxu0 0.0
        %612 = vmatprep.subr.mxu0 0.0
        %613 = vmatpush2.msra.mxu0 0.0
        %614 = vmatprep.mubr.f32.mxu0 0.0
        %615 = vmatmul.mubr.f32.gmra.mxu0 %v548
        %v616 = vpop.f32.mrf.mxu0
        %v617 = vadd.f32 %v545, %v616
        %v618 = vpop.f32.mrf.mxu0
        %v619 = vadd.f32 %v545, %v618
        %620 = vdwg.mxu0
        %v623 = vcombine.low %v617, %v619
        %v625 = vadd.f32 %v231, %v623
        %626 = vst [vmem:[%s217] sm:$0xff] %v625
        %s627 = sand.u32 %s137, 1
        %s628 = scalar_lea.sflag [#allocation3], %s627
        %s629 = sand.u32 %s137, 1
        %s630 = smul.addr %s629, 8
        %s631 = scalar_lea.vmem [#allocation2], %s630
        // Predicated region
        $region41: #{tpu_custom_call.1} parent=39 // pred_check
          %p632 = pneg %p147
        $region42: #{tpu_custom_call.1} parent=39 // pred_check_branch
          %634 = sbr.rel (%p632) target = $region44
        $region43: #{tpu_custom_call.1} parent=39 // pred_region
          %s636 = ssub.s32 128, 128
          %637 = vsyncadd %s628, %s636
          %s638 = smul.addr %s19, 2
          %s639 = smul.addr %s638, 64
          %s640 = scalar_lea.hbm %s5, %s639
          %s642 = sshll.u32 %s631, 4
          %s643 = int_to_ptr.vmem [resolvable:$true] %s642
          %645 = dma.vmem_to_hbm [thread:$0]  %s643, 128, %s640, %s628
        $region44: #{tpu_custom_call.1} parent=39 // pred_fallthru
          _
      $region40: #{tpu_custom_call.1} parent=5 // pred_fallthru
        _
      %p646 = scmp.le.s32.totalorder 2, %s14
      // Predicated region
      $region45: #{tpu_custom_call.1} parent=5 // pred_check
        %p647 = pneg %p646
      $region46: #{tpu_custom_call.1} parent=5 // pred_check_branch
        %649 = sbr.rel (%p647) target = $region48
      $region47: #{tpu_custom_call.1} parent=5 // pred_region
        %s650 = ssub.s32 %s14, 2
        // Predicated region
        $region49: #{tpu_custom_call.1} parent=47 // pred_check
          %p651 = pneg %p153
        $region50: #{tpu_custom_call.1} parent=47 // pred_check_branch
          %653 = sbr.rel (%p651) target = $region52
        $region51: #{tpu_custom_call.1} parent=47 // pred_region
          %s654 = sand.u32 %s138, 1
          %s655 = scalar_lea.sflag [#allocation3], %s654
          %s656 = sand.u32 %s138, 1
          %s657 = smul.addr %s656, 8
          %s658 = scalar_lea.vmem [#allocation2], %s657
          %659 = dma.done %s655, 128
        $region52: #{tpu_custom_call.1} parent=47 // pred_fallthru
          _
      $region48: #{tpu_custom_call.1} parent=5 // pred_fallthru
        _
    $region6: #{tpu_custom_call.1} parent=1 // loop_footer
      %s18 = sadd.s32 1, %s14
    $region7: #{tpu_custom_call.1} parent=1 // loop_footer_branch
      %13 = sbr.rel target = $region3
    $region8: #{tpu_custom_call.1} parent=1 // loop_exit
      _
    %660 = vsyncpa [#allocation3], 1
    %s661 = scalar_lea.sflag [#allocation3], 1
    %662 = vsyncpa %s661, 1

</llo_original>
